<compile_context>
chip_gen: v5e
topology: v5e:2x2
jax: 0.10.0
libtpu: 0.0.40
codegen_flags: <defaults>
</compile_context>

<pallas_src>
import functools
import math

import jax
import jax.numpy as jnp
from jax.experimental import pallas as pl
from jax.experimental.pallas import tpu as pltpu


def _fused_conv_embedding_kernel(idx_ref, x_ref, g_ref,
                                 w1_ref, w2_ref, w3_ref, w4_ref,
                                 b_ref, gamma_ref, beta_ref,
                                 o_ref, slab_ref, *, batch):
    """4x (X@W + b -> G@H -> ReLU -> LayerNorm), lane-concat, in-kernel gather.

    G, the running activation and every intermediate stay VMEM-resident; only
    the gathered (batch, 4*D) rows are written back to HBM.
    """
    h = x_ref[...]                 # (N, input_dim) f32, dropout already applied
    g = g_ref[...]                 # (N, N) f32 filter matrix, loaded once

    outs = []
    for l, w_ref in enumerate((w1_ref, w2_ref, w3_ref, w4_ref)):
        # H = X @ W + b            (f32 on the MXU; bf16 only pays off at large N)
        hw = jnp.dot(h, w_ref[...], preferred_element_type=jnp.float32)
        hw = hw + b_ref[l]                                   # (N,D) + (1,D)
        # H = G @ H                (torch.sparse.mm(G, .) as a dense GEMM)
        hg = jnp.dot(g, hw, preferred_element_type=jnp.float32)
        # ReLU + LayerNorm over features (eps = 1e-5, PyTorch default),
        # single-pass statistics: var = E[x^2] - E[x]^2.
        hr = jnp.maximum(hg, 0.0)
        s1 = jnp.mean(hr, axis=-1, keepdims=True)
        s2 = jnp.mean(hr * hr, axis=-1, keepdims=True)
        var = s2 - s1 * s1
        hn = (hr - s1) * jax.lax.rsqrt(var + 1e-5)
        out = hn * gamma_ref[l] + beta_ref[l]
        outs.append(out)
        h = out

    # One unmasked, lane-dense store of the full (N, 4*D) slab into VMEM scratch.
    slab_ref[...] = jnp.concatenate(outs, axis=-1)

    # Row gather embed[idx] done in-kernel (idx lives in SMEM, 0-based already).
    for i in range(batch):
        r = idx_ref[i]
        o_ref[pl.ds(i, 1), :] = slab_ref[pl.ds(r, 1), :]


def prepare_params(params):
    """One-time parameter packing (hoisted out of the per-call path)."""
    d = params[0][0].shape[1]
    ws = tuple(p[0].astype(jnp.float32) for p in params)
    b = jnp.stack([p[1] for p in params]).reshape(4, 1, d).astype(jnp.float32)
    gamma = jnp.stack([p[2] for p in params]).reshape(4, 1, d).astype(jnp.float32)
    beta = jnp.stack([p[3] for p in params]).reshape(4, 1, d).astype(jnp.float32)
    return ws, b, gamma, beta


@functools.partial(jax.jit, static_argnames=("dropout_prob",))
def conv_embedding_4_forward(x, embeddings, G, packed, key, *, dropout_prob):
    """x: int indices (1-based); returns (concat-embedding rows, recon_loss)."""
    ws, b, gamma, beta = packed
    n = embeddings.shape[0]
    d = b.shape[-1]
    batch = x.shape[0]
    idx = (x - 1).astype(jnp.int32)

    # SparseDropout: keep iff (rand + kprob).floor() == 1  <=>  rand >= dprob.
    # TODO(synk): torch uses a sparse G / sparse embedding storage and torch's
    # RNG stream; here G is dense and the mask comes from jax.random (in-kernel
    # pltpu PRNG is unavailable on the interpret/CPU path).
    kprob = 1.0 - dropout_prob
    rand = jax.random.uniform(key, embeddings.shape, jnp.float32)
    x_drop = jnp.where(rand >= jnp.float32(dropout_prob),
                       embeddings.astype(jnp.float32) * (1.0 / kprob),
                       jnp.float32(0.0))

    kernel = functools.partial(_fused_conv_embedding_kernel, batch=batch)
    smem = pl.BlockSpec(memory_space=pltpu.MemorySpace.SMEM)
    vmem = pl.BlockSpec(memory_space=pltpu.MemorySpace.VMEM)

    embed = pl.pallas_call(
        kernel,
        out_shape=jax.ShapeDtypeStruct((batch, 4 * d), jnp.float32),
        in_specs=[smem] + [vmem] * 9,
        out_specs=vmem,
        scratch_shapes=[pltpu.VMEM((n, 4 * d), jnp.float32)],
    )(idx, x_drop, G.astype(jnp.float32), *ws, b, gamma, beta)

    recon_loss = jnp.zeros((1,), jnp.float32)
    return embed, recon_loss


def init_conv_layer_params(key, input_dim, output_dim):
    """Mirrors Conv_layer.reset_parameters: U(-stdv, stdv), stdv = 1/sqrt(out)."""
    stdv = 1.0 / math.sqrt(output_dim)
    kw, kb = jax.random.split(key)
    w = jax.random.uniform(kw, (input_dim, output_dim), jnp.float32, -stdv, stdv)
    b = jax.random.uniform(kb, (output_dim,), jnp.float32, -stdv, stdv)
    return w, b


def init_params(key, input_dim, out_dim):
    hidden_dim = out_dim  # Conv_Embedding_4 overrides hidden_dim = out_dim
    dims = [(input_dim, hidden_dim), (hidden_dim, hidden_dim),
            (hidden_dim, hidden_dim), (hidden_dim, out_dim)]
    params = []
    for di, do in dims:
        key, sub = jax.random.split(key)
        w, b = init_conv_layer_params(sub, di, do)
        gamma = jnp.ones((do,), jnp.float32)   # LayerNorm default init
        beta = jnp.zeros((do,), jnp.float32)
        params.append((w, b, gamma, beta))
    return params


if __name__ == "__main__":
    key = jax.random.PRNGKey(0)
    k_embed, k_g, k_params, k_idx, k_drop = jax.random.split(key, 5)

    N = 16          # number of nodes in the embedding / filter matrix
    input_dim = 32  # embedding feature dim
    out_dim = 32    # hidden_dim == out_dim in Conv_Embedding_4
    batch = 8       # number of query indices

    # Deterministic synthetic "checkpoint"
    embeddings = jax.random.normal(k_embed, (N, input_dim), jnp.float32)
    G_raw = jnp.abs(jax.random.normal(k_g, (N, N), jnp.float32)) + jnp.eye(N)
    G = G_raw / jnp.sum(G_raw, axis=1, keepdims=True)   # dense stand-in for sparse G
    params = init_params(k_params, input_dim, out_dim)
    packed = prepare_params(params)                     # one-time packing

    # 1-based indices, as in the PyTorch forward (idx = x - 1)
    x = jax.random.randint(k_idx, (batch,), 1, N + 1, dtype=jnp.int32)

    embed, recon = conv_embedding_4_forward(
        x, embeddings, G, packed, k_drop, dropout_prob=0.5)
    jax.block_until_ready((embed, recon))

    assert embed.shape == (batch, 4 * out_dim)
    assert recon.shape == (1,)
    assert bool(jnp.all(jnp.isfinite(embed)))
    print("KERNEL_OK")
</pallas_src>

<mosaic_0001>
module attributes {stable_mosaic.version = 11 : i64} {
  func.func @_fused_conv_embedding_kernel(%arg0: memref<8xi32, #tpu.memory_space<smem>>, %arg1: memref<16x32xf32, #tpu.memory_space<vmem>>, %arg2: memref<16x16xf32, #tpu.memory_space<vmem>>, %arg3: memref<32x32xf32, #tpu.memory_space<vmem>>, %arg4: memref<32x32xf32, #tpu.memory_space<vmem>>, %arg5: memref<32x32xf32, #tpu.memory_space<vmem>>, %arg6: memref<32x32xf32, #tpu.memory_space<vmem>>, %arg7: memref<4x1x32xf32, #tpu.memory_space<vmem>>, %arg8: memref<4x1x32xf32, #tpu.memory_space<vmem>>, %arg9: memref<4x1x32xf32, #tpu.memory_space<vmem>>, %arg10: memref<8x128xf32, #tpu.memory_space<vmem>>, %arg11: memref<16x128xf32, #tpu.memory_space<vmem>>) attributes {dimension_semantics = [], scalar_prefetch = 0 : i64, scratch_operands = 1 : i64, tpu.core_type = #tpu.core_type<tc>} {
    %c0 = arith.constant 0 : index
    %c0_0 = arith.constant 0 : index
    %0 = vector.load %arg1[%c0, %c0_0] : memref<16x32xf32, #tpu.memory_space<vmem>>, vector<16x32xf32>
    %c0_1 = arith.constant 0 : index
    %c0_2 = arith.constant 0 : index
    %1 = vector.load %arg2[%c0_1, %c0_2] : memref<16x16xf32, #tpu.memory_space<vmem>>, vector<16x16xf32>
    %c0_3 = arith.constant 0 : index
    %c0_4 = arith.constant 0 : index
    %2 = vector.load %arg3[%c0_3, %c0_4] : memref<32x32xf32, #tpu.memory_space<vmem>>, vector<32x32xf32>
    %cst = arith.constant dense<0.000000e+00> : vector<16x32xf32>
    %3 = tpu.matmul %0, %2, %cst {dimension_numbers = #tpu.dot_dimension_numbers<[1], [0], [0], [1], [0, 0, 1, 1], [], []>} : vector<16x32xf32>, vector<32x32xf32>, vector<16x32xf32> -> vector<16x32xf32>
    %c0_5 = arith.constant 0 : index
    %c0_6 = arith.constant 0 : index
    %c0_7 = arith.constant 0 : index
    %4 = vector.load %arg7[%c0_5, %c0_6, %c0_7] : memref<4x1x32xf32, #tpu.memory_space<vmem>>, vector<1x1x32xf32>
    %5 = vector.shape_cast %4 : vector<1x1x32xf32> to vector<1x32xf32>
    %6 = vector.broadcast %5 : vector<1x32xf32> to vector<16x32xf32>
    %7 = arith.addf %3, %6 : vector<16x32xf32>
    %cst_8 = arith.constant dense<0.000000e+00> : vector<16x32xf32>
    %8 = tpu.matmul %1, %7, %cst_8 {dimension_numbers = #tpu.dot_dimension_numbers<[1], [0], [0], [1], [0, 0, 1, 1], [], []>} : vector<16x16xf32>, vector<16x32xf32>, vector<16x32xf32> -> vector<16x32xf32>
    %cst_9 = arith.constant 0.000000e+00 : f32
    %9 = vector.broadcast %cst_9 : f32 to vector<16x32xf32>
    %10 = arith.maximumf %8, %9 : vector<16x32xf32>
    %cst_10 = arith.constant dense<0.000000e+00> : vector<16xf32>
    %11 = vector.multi_reduction <add>, %10, %cst_10 [1] : vector<16x32xf32> to vector<16xf32>
    %12 = vector.shape_cast %11 : vector<16xf32> to vector<16x1xf32>
    %cst_11 = arith.constant 3.200000e+01 : f32
    %13 = vector.broadcast %cst_11 : f32 to vector<16x1xf32>
    %14 = arith.divf %12, %13 : vector<16x1xf32>
    %15 = arith.mulf %10, %10 : vector<16x32xf32>
    %cst_12 = arith.constant dense<0.000000e+00> : vector<16xf32>
    %16 = vector.multi_reduction <add>, %15, %cst_12 [1] : vector<16x32xf32> to vector<16xf32>
    %17 = vector.shape_cast %16 : vector<16xf32> to vector<16x1xf32>
    %cst_13 = arith.constant 3.200000e+01 : f32
    %18 = vector.broadcast %cst_13 : f32 to vector<16x1xf32>
    %19 = arith.divf %17, %18 : vector<16x1xf32>
    %20 = arith.mulf %14, %14 : vector<16x1xf32>
    %21 = arith.subf %19, %20 : vector<16x1xf32>
    %22 = vector.broadcast %14 : vector<16x1xf32> to vector<16x32xf32>
    %23 = arith.subf %10, %22 : vector<16x32xf32>
    %cst_14 = arith.constant 9.99999974E-6 : f32
    %24 = vector.broadcast %cst_14 : f32 to vector<16x1xf32>
    %25 = arith.addf %21, %24 : vector<16x1xf32>
    %26 = math.rsqrt %25 : vector<16x1xf32>
    %27 = vector.broadcast %26 : vector<16x1xf32> to vector<16x32xf32>
    %28 = arith.mulf %23, %27 : vector<16x32xf32>
    %c0_15 = arith.constant 0 : index
    %c0_16 = arith.constant 0 : index
    %c0_17 = arith.constant 0 : index
    %29 = vector.load %arg8[%c0_15, %c0_16, %c0_17] : memref<4x1x32xf32, #tpu.memory_space<vmem>>, vector<1x1x32xf32>
    %30 = vector.shape_cast %29 : vector<1x1x32xf32> to vector<1x32xf32>
    %31 = vector.broadcast %30 : vector<1x32xf32> to vector<16x32xf32>
    %32 = arith.mulf %28, %31 : vector<16x32xf32>
    %c0_18 = arith.constant 0 : index
    %c0_19 = arith.constant 0 : index
    %c0_20 = arith.constant 0 : index
    %33 = vector.load %arg9[%c0_18, %c0_19, %c0_20] : memref<4x1x32xf32, #tpu.memory_space<vmem>>, vector<1x1x32xf32>
    %34 = vector.shape_cast %33 : vector<1x1x32xf32> to vector<1x32xf32>
    %35 = vector.broadcast %34 : vector<1x32xf32> to vector<16x32xf32>
    %36 = arith.addf %32, %35 : vector<16x32xf32>
    %c0_21 = arith.constant 0 : index
    %c0_22 = arith.constant 0 : index
    %37 = vector.load %arg4[%c0_21, %c0_22] : memref<32x32xf32, #tpu.memory_space<vmem>>, vector<32x32xf32>
    %cst_23 = arith.constant dense<0.000000e+00> : vector<16x32xf32>
    %38 = tpu.matmul %36, %37, %cst_23 {dimension_numbers = #tpu.dot_dimension_numbers<[1], [0], [0], [1], [0, 0, 1, 1], [], []>} : vector<16x32xf32>, vector<32x32xf32>, vector<16x32xf32> -> vector<16x32xf32>
    %c1 = arith.constant 1 : index
    %c0_24 = arith.constant 0 : index
    %c0_25 = arith.constant 0 : index
    %39 = vector.load %arg7[%c1, %c0_24, %c0_25] : memref<4x1x32xf32, #tpu.memory_space<vmem>>, vector<1x1x32xf32>
    %40 = vector.shape_cast %39 : vector<1x1x32xf32> to vector<1x32xf32>
    %41 = vector.broadcast %40 : vector<1x32xf32> to vector<16x32xf32>
    %42 = arith.addf %38, %41 : vector<16x32xf32>
    %cst_26 = arith.constant dense<0.000000e+00> : vector<16x32xf32>
    %43 = tpu.matmul %1, %42, %cst_26 {dimension_numbers = #tpu.dot_dimension_numbers<[1], [0], [0], [1], [0, 0, 1, 1], [], []>} : vector<16x16xf32>, vector<16x32xf32>, vector<16x32xf32> -> vector<16x32xf32>
    %cst_27 = arith.constant 0.000000e+00 : f32
    %44 = vector.broadcast %cst_27 : f32 to vector<16x32xf32>
    %45 = arith.maximumf %43, %44 : vector<16x32xf32>
    %cst_28 = arith.constant dense<0.000000e+00> : vector<16xf32>
    %46 = vector.multi_reduction <add>, %45, %cst_28 [1] : vector<16x32xf32> to vector<16xf32>
    %47 = vector.shape_cast %46 : vector<16xf32> to vector<16x1xf32>
    %cst_29 = arith.constant 3.200000e+01 : f32
    %48 = vector.broadcast %cst_29 : f32 to vector<16x1xf32>
    %49 = arith.divf %47, %48 : vector<16x1xf32>
    %50 = arith.mulf %45, %45 : vector<16x32xf32>
    %cst_30 = arith.constant dense<0.000000e+00> : vector<16xf32>
    %51 = vector.multi_reduction <add>, %50, %cst_30 [1] : vector<16x32xf32> to vector<16xf32>
    %52 = vector.shape_cast %51 : vector<16xf32> to vector<16x1xf32>
    %cst_31 = arith.constant 3.200000e+01 : f32
    %53 = vector.broadcast %cst_31 : f32 to vector<16x1xf32>
    %54 = arith.divf %52, %53 : vector<16x1xf32>
    %55 = arith.mulf %49, %49 : vector<16x1xf32>
    %56 = arith.subf %54, %55 : vector<16x1xf32>
    %57 = vector.broadcast %49 : vector<16x1xf32> to vector<16x32xf32>
    %58 = arith.subf %45, %57 : vector<16x32xf32>
    %cst_32 = arith.constant 9.99999974E-6 : f32
    %59 = vector.broadcast %cst_32 : f32 to vector<16x1xf32>
    %60 = arith.addf %56, %59 : vector<16x1xf32>
    %61 = math.rsqrt %60 : vector<16x1xf32>
    %62 = vector.broadcast %61 : vector<16x1xf32> to vector<16x32xf32>
    %63 = arith.mulf %58, %62 : vector<16x32xf32>
    %c1_33 = arith.constant 1 : index
    %c0_34 = arith.constant 0 : index
    %c0_35 = arith.constant 0 : index
    %64 = vector.load %arg8[%c1_33, %c0_34, %c0_35] : memref<4x1x32xf32, #tpu.memory_space<vmem>>, vector<1x1x32xf32>
    %65 = vector.shape_cast %64 : vector<1x1x32xf32> to vector<1x32xf32>
    %66 = vector.broadcast %65 : vector<1x32xf32> to vector<16x32xf32>
    %67 = arith.mulf %63, %66 : vector<16x32xf32>
    %c1_36 = arith.constant 1 : index
    %c0_37 = arith.constant 0 : index
    %c0_38 = arith.constant 0 : index
    %68 = vector.load %arg9[%c1_36, %c0_37, %c0_38] : memref<4x1x32xf32, #tpu.memory_space<vmem>>, vector<1x1x32xf32>
    %69 = vector.shape_cast %68 : vector<1x1x32xf32> to vector<1x32xf32>
    %70 = vector.broadcast %69 : vector<1x32xf32> to vector<16x32xf32>
    %71 = arith.addf %67, %70 : vector<16x32xf32>
    %c0_39 = arith.constant 0 : index
    %c0_40 = arith.constant 0 : index
    %72 = vector.load %arg5[%c0_39, %c0_40] : memref<32x32xf32, #tpu.memory_space<vmem>>, vector<32x32xf32>
    %cst_41 = arith.constant dense<0.000000e+00> : vector<16x32xf32>
    %73 = tpu.matmul %71, %72, %cst_41 {dimension_numbers = #tpu.dot_dimension_numbers<[1], [0], [0], [1], [0, 0, 1, 1], [], []>} : vector<16x32xf32>, vector<32x32xf32>, vector<16x32xf32> -> vector<16x32xf32>
    %c2 = arith.constant 2 : index
    %c0_42 = arith.constant 0 : index
    %c0_43 = arith.constant 0 : index
    %74 = vector.load %arg7[%c2, %c0_42, %c0_43] : memref<4x1x32xf32, #tpu.memory_space<vmem>>, vector<1x1x32xf32>
    %75 = vector.shape_cast %74 : vector<1x1x32xf32> to vector<1x32xf32>
    %76 = vector.broadcast %75 : vector<1x32xf32> to vector<16x32xf32>
    %77 = arith.addf %73, %76 : vector<16x32xf32>
    %cst_44 = arith.constant dense<0.000000e+00> : vector<16x32xf32>
    %78 = tpu.matmul %1, %77, %cst_44 {dimension_numbers = #tpu.dot_dimension_numbers<[1], [0], [0], [1], [0, 0, 1, 1], [], []>} : vector<16x16xf32>, vector<16x32xf32>, vector<16x32xf32> -> vector<16x32xf32>
    %cst_45 = arith.constant 0.000000e+00 : f32
    %79 = vector.broadcast %cst_45 : f32 to vector<16x32xf32>
    %80 = arith.maximumf %78, %79 : vector<16x32xf32>
    %cst_46 = arith.constant dense<0.000000e+00> : vector<16xf32>
    %81 = vector.multi_reduction <add>, %80, %cst_46 [1] : vector<16x32xf32> to vector<16xf32>
    %82 = vector.shape_cast %81 : vector<16xf32> to vector<16x1xf32>
    %cst_47 = arith.constant 3.200000e+01 : f32
    %83 = vector.broadcast %cst_47 : f32 to vector<16x1xf32>
    %84 = arith.divf %82, %83 : vector<16x1xf32>
    %85 = arith.mulf %80, %80 : vector<16x32xf32>
    %cst_48 = arith.constant dense<0.000000e+00> : vector<16xf32>
    %86 = vector.multi_reduction <add>, %85, %cst_48 [1] : vector<16x32xf32> to vector<16xf32>
    %87 = vector.shape_cast %86 : vector<16xf32> to vector<16x1xf32>
    %cst_49 = arith.constant 3.200000e+01 : f32
    %88 = vector.broadcast %cst_49 : f32 to vector<16x1xf32>
    %89 = arith.divf %87, %88 : vector<16x1xf32>
    %90 = arith.mulf %84, %84 : vector<16x1xf32>
    %91 = arith.subf %89, %90 : vector<16x1xf32>
    %92 = vector.broadcast %84 : vector<16x1xf32> to vector<16x32xf32>
    %93 = arith.subf %80, %92 : vector<16x32xf32>
    %cst_50 = arith.constant 9.99999974E-6 : f32
    %94 = vector.broadcast %cst_50 : f32 to vector<16x1xf32>
    %95 = arith.addf %91, %94 : vector<16x1xf32>
    %96 = math.rsqrt %95 : vector<16x1xf32>
    %97 = vector.broadcast %96 : vector<16x1xf32> to vector<16x32xf32>
    %98 = arith.mulf %93, %97 : vector<16x32xf32>
    %c2_51 = arith.constant 2 : index
    %c0_52 = arith.constant 0 : index
    %c0_53 = arith.constant 0 : index
    %99 = vector.load %arg8[%c2_51, %c0_52, %c0_53] : memref<4x1x32xf32, #tpu.memory_space<vmem>>, vector<1x1x32xf32>
    %100 = vector.shape_cast %99 : vector<1x1x32xf32> to vector<1x32xf32>
    %101 = vector.broadcast %100 : vector<1x32xf32> to vector<16x32xf32>
    %102 = arith.mulf %98, %101 : vector<16x32xf32>
    %c2_54 = arith.constant 2 : index
    %c0_55 = arith.constant 0 : index
    %c0_56 = arith.constant 0 : index
    %103 = vector.load %arg9[%c2_54, %c0_55, %c0_56] : memref<4x1x32xf32, #tpu.memory_space<vmem>>, vector<1x1x32xf32>
    %104 = vector.shape_cast %103 : vector<1x1x32xf32> to vector<1x32xf32>
    %105 = vector.broadcast %104 : vector<1x32xf32> to vector<16x32xf32>
    %106 = arith.addf %102, %105 : vector<16x32xf32>
    %c0_57 = arith.constant 0 : index
    %c0_58 = arith.constant 0 : index
    %107 = vector.load %arg6[%c0_57, %c0_58] : memref<32x32xf32, #tpu.memory_space<vmem>>, vector<32x32xf32>
    %cst_59 = arith.constant dense<0.000000e+00> : vector<16x32xf32>
    %108 = tpu.matmul %106, %107, %cst_59 {dimension_numbers = #tpu.dot_dimension_numbers<[1], [0], [0], [1], [0, 0, 1, 1], [], []>} : vector<16x32xf32>, vector<32x32xf32>, vector<16x32xf32> -> vector<16x32xf32>
    %c3 = arith.constant 3 : index
    %c0_60 = arith.constant 0 : index
    %c0_61 = arith.constant 0 : index
    %109 = vector.load %arg7[%c3, %c0_60, %c0_61] : memref<4x1x32xf32, #tpu.memory_space<vmem>>, vector<1x1x32xf32>
    %110 = vector.shape_cast %109 : vector<1x1x32xf32> to vector<1x32xf32>
    %111 = vector.broadcast %110 : vector<1x32xf32> to vector<16x32xf32>
    %112 = arith.addf %108, %111 : vector<16x32xf32>
    %cst_62 = arith.constant dense<0.000000e+00> : vector<16x32xf32>
    %113 = tpu.matmul %1, %112, %cst_62 {dimension_numbers = #tpu.dot_dimension_numbers<[1], [0], [0], [1], [0, 0, 1, 1], [], []>} : vector<16x16xf32>, vector<16x32xf32>, vector<16x32xf32> -> vector<16x32xf32>
    %cst_63 = arith.constant 0.000000e+00 : f32
    %114 = vector.broadcast %cst_63 : f32 to vector<16x32xf32>
    %115 = arith.maximumf %113, %114 : vector<16x32xf32>
    %cst_64 = arith.constant dense<0.000000e+00> : vector<16xf32>
    %116 = vector.multi_reduction <add>, %115, %cst_64 [1] : vector<16x32xf32> to vector<16xf32>
    %117 = vector.shape_cast %116 : vector<16xf32> to vector<16x1xf32>
    %cst_65 = arith.constant 3.200000e+01 : f32
    %118 = vector.broadcast %cst_65 : f32 to vector<16x1xf32>
    %119 = arith.divf %117, %118 : vector<16x1xf32>
    %120 = arith.mulf %115, %115 : vector<16x32xf32>
    %cst_66 = arith.constant dense<0.000000e+00> : vector<16xf32>
    %121 = vector.multi_reduction <add>, %120, %cst_66 [1] : vector<16x32xf32> to vector<16xf32>
    %122 = vector.shape_cast %121 : vector<16xf32> to vector<16x1xf32>
    %cst_67 = arith.constant 3.200000e+01 : f32
    %123 = vector.broadcast %cst_67 : f32 to vector<16x1xf32>
    %124 = arith.divf %122, %123 : vector<16x1xf32>
    %125 = arith.mulf %119, %119 : vector<16x1xf32>
    %126 = arith.subf %124, %125 : vector<16x1xf32>
    %127 = vector.broadcast %119 : vector<16x1xf32> to vector<16x32xf32>
    %128 = arith.subf %115, %127 : vector<16x32xf32>
    %cst_68 = arith.constant 9.99999974E-6 : f32
    %129 = vector.broadcast %cst_68 : f32 to vector<16x1xf32>
    %130 = arith.addf %126, %129 : vector<16x1xf32>
    %131 = math.rsqrt %130 : vector<16x1xf32>
    %132 = vector.broadcast %131 : vector<16x1xf32> to vector<16x32xf32>
    %133 = arith.mulf %128, %132 : vector<16x32xf32>
    %c3_69 = arith.constant 3 : index
    %c0_70 = arith.constant 0 : index
    %c0_71 = arith.constant 0 : index
    %134 = vector.load %arg8[%c3_69, %c0_70, %c0_71] : memref<4x1x32xf32, #tpu.memory_space<vmem>>, vector<1x1x32xf32>
    %135 = vector.shape_cast %134 : vector<1x1x32xf32> to vector<1x32xf32>
    %136 = vector.broadcast %135 : vector<1x32xf32> to vector<16x32xf32>
    %137 = arith.mulf %133, %136 : vector<16x32xf32>
    %c3_72 = arith.constant 3 : index
    %c0_73 = arith.constant 0 : index
    %c0_74 = arith.constant 0 : index
    %138 = vector.load %arg9[%c3_72, %c0_73, %c0_74] : memref<4x1x32xf32, #tpu.memory_space<vmem>>, vector<1x1x32xf32>
    %139 = vector.shape_cast %138 : vector<1x1x32xf32> to vector<1x32xf32>
    %140 = vector.broadcast %139 : vector<1x32xf32> to vector<16x32xf32>
    %141 = arith.addf %137, %140 : vector<16x32xf32>
    %142 = tpu.concatenate %36, %71, %106, %141 in 1 : vector<16x32xf32>, vector<16x32xf32>, vector<16x32xf32>, vector<16x32xf32> -> vector<16x128xf32>
    %c0_75 = arith.constant 0 : index
    %c0_76 = arith.constant 0 : index
    %143 = vector.load %arg11[%c0_75, %c0_76] : memref<16x128xf32, #tpu.memory_space<vmem>>, vector<16x128xf32>
    tpu.vector_store %arg11[%c0_75, %c0_76], %142 {strides = array<i32>} : memref<16x128xf32, #tpu.memory_space<vmem>>, vector<16x128xf32>,
    %c0_77 = arith.constant 0 : index
    %144 = memref.load %arg0[%c0_77] : memref<8xi32, #tpu.memory_space<smem>>
    %145 = arith.index_cast %144 : i32 to index
    %c0_78 = arith.constant 0 : index
    %146 = vector.load %arg11[%145, %c0_78] : memref<16x128xf32, #tpu.memory_space<vmem>>, vector<1x128xf32>
    %c0_79 = arith.constant 0 : index
    %c0_80 = arith.constant 0 : index
    %147 = vector.load %arg10[%c0_79, %c0_80] : memref<8x128xf32, #tpu.memory_space<vmem>>, vector<1x128xf32>
    tpu.vector_store %arg10[%c0_79, %c0_80], %146 {strides = array<i32>} : memref<8x128xf32, #tpu.memory_space<vmem>>, vector<1x128xf32>,
    %c1_81 = arith.constant 1 : index
    %148 = memref.load %arg0[%c1_81] : memref<8xi32, #tpu.memory_space<smem>>
    %149 = arith.index_cast %148 : i32 to index
    %c0_82 = arith.constant 0 : index
    %150 = vector.load %arg11[%149, %c0_82] : memref<16x128xf32, #tpu.memory_space<vmem>>, vector<1x128xf32>
    %c1_83 = arith.constant 1 : index
    %c0_84 = arith.constant 0 : index
    %151 = vector.load %arg10[%c1_83, %c0_84] : memref<8x128xf32, #tpu.memory_space<vmem>>, vector<1x128xf32>
    tpu.vector_store %arg10[%c1_83, %c0_84], %150 {strides = array<i32>} : memref<8x128xf32, #tpu.memory_space<vmem>>, vector<1x128xf32>,
    %c2_85 = arith.constant 2 : index
    %152 = memref.load %arg0[%c2_85] : memref<8xi32, #tpu.memory_space<smem>>
    %153 = arith.index_cast %152 : i32 to index
    %c0_86 = arith.constant 0 : index
    %154 = vector.load %arg11[%153, %c0_86] : memref<16x128xf32, #tpu.memory_space<vmem>>, vector<1x128xf32>
    %c2_87 = arith.constant 2 : index
    %c0_88 = arith.constant 0 : index
    %155 = vector.load %arg10[%c2_87, %c0_88] : memref<8x128xf32, #tpu.memory_space<vmem>>, vector<1x128xf32>
    tpu.vector_store %arg10[%c2_87, %c0_88], %154 {strides = array<i32>} : memref<8x128xf32, #tpu.memory_space<vmem>>, vector<1x128xf32>,
    %c3_89 = arith.constant 3 : index
    %156 = memref.load %arg0[%c3_89] : memref<8xi32, #tpu.memory_space<smem>>
    %157 = arith.index_cast %156 : i32 to index
    %c0_90 = arith.constant 0 : index
    %158 = vector.load %arg11[%157, %c0_90] : memref<16x128xf32, #tpu.memory_space<vmem>>, vector<1x128xf32>
    %c3_91 = arith.constant 3 : index
    %c0_92 = arith.constant 0 : index
    %159 = vector.load %arg10[%c3_91, %c0_92] : memref<8x128xf32, #tpu.memory_space<vmem>>, vector<1x128xf32>
    tpu.vector_store %arg10[%c3_91, %c0_92], %158 {strides = array<i32>} : memref<8x128xf32, #tpu.memory_space<vmem>>, vector<1x128xf32>,
    %c4 = arith.constant 4 : index
    %160 = memref.load %arg0[%c4] : memref<8xi32, #tpu.memory_space<smem>>
    %161 = arith.index_cast %160 : i32 to index
    %c0_93 = arith.constant 0 : index
    %162 = vector.load %arg11[%161, %c0_93] : memref<16x128xf32, #tpu.memory_space<vmem>>, vector<1x128xf32>
    %c4_94 = arith.constant 4 : index
    %c0_95 = arith.constant 0 : index
    %163 = vector.load %arg10[%c4_94, %c0_95] : memref<8x128xf32, #tpu.memory_space<vmem>>, vector<1x128xf32>
    tpu.vector_store %arg10[%c4_94, %c0_95], %162 {strides = array<i32>} : memref<8x128xf32, #tpu.memory_space<vmem>>, vector<1x128xf32>,
    %c5 = arith.constant 5 : index
    %164 = memref.load %arg0[%c5] : memref<8xi32, #tpu.memory_space<smem>>
    %165 = arith.index_cast %164 : i32 to index
    %c0_96 = arith.constant 0 : index
    %166 = vector.load %arg11[%165, %c0_96] : memref<16x128xf32, #tpu.memory_space<vmem>>, vector<1x128xf32>
    %c5_97 = arith.constant 5 : index
    %c0_98 = arith.constant 0 : index
    %167 = vector.load %arg10[%c5_97, %c0_98] : memref<8x128xf32, #tpu.memory_space<vmem>>, vector<1x128xf32>
    tpu.vector_store %arg10[%c5_97, %c0_98], %166 {strides = array<i32>} : memref<8x128xf32, #tpu.memory_space<vmem>>, vector<1x128xf32>,
    %c6 = arith.constant 6 : index
    %168 = memref.load %arg0[%c6] : memref<8xi32, #tpu.memory_space<smem>>
    %169 = arith.index_cast %168 : i32 to index
    %c0_99 = arith.constant 0 : index
    %170 = vector.load %arg11[%169, %c0_99] : memref<16x128xf32, #tpu.memory_space<vmem>>, vector<1x128xf32>
    %c6_100 = arith.constant 6 : index
    %c0_101 = arith.constant 0 : index
    %171 = vector.load %arg10[%c6_100, %c0_101] : memref<8x128xf32, #tpu.memory_space<vmem>>, vector<1x128xf32>
    tpu.vector_store %arg10[%c6_100, %c0_101], %170 {strides = array<i32>} : memref<8x128xf32, #tpu.memory_space<vmem>>, vector<1x128xf32>,
    %c7 = arith.constant 7 : index
    %172 = memref.load %arg0[%c7] : memref<8xi32, #tpu.memory_space<smem>>
    %173 = arith.index_cast %172 : i32 to index
    %c0_102 = arith.constant 0 : index
    %174 = vector.load %arg11[%173, %c0_102] : memref<16x128xf32, #tpu.memory_space<vmem>>, vector<1x128xf32>
    %c7_103 = arith.constant 7 : index
    %c0_104 = arith.constant 0 : index
    %175 = vector.load %arg10[%c7_103, %c0_104] : memref<8x128xf32, #tpu.memory_space<vmem>>, vector<1x128xf32>
    tpu.vector_store %arg10[%c7_103, %c0_104], %174 {strides = array<i32>} : memref<8x128xf32, #tpu.memory_space<vmem>>, vector<1x128xf32>,
    return
  }
}

</mosaic_0001>

<llo_original>
// kernel: conv_embedding_4_forward.1
$region0: #{conv_embedding_4_forward.1}
  #allocation0 [shape = 'u32[]', space=smem, size = 0x4, offset = 0x4, fixed_abs, tag = 'smem constant byte address 0x4 - core index']
  #allocation1 [shape = 'u32[72,128]{1,0:T(1,128)}', space=vmem, size = 0x9000, scoped, tag = 'internal scratch']
  #allocation2 [shape = 'f32[16,128]{1,0:T(8,128)}', space=vmem, size = 0x2000, scoped, tag = 'scratch operand']
  %s0 = inlined_call_operand.vmem [shape: s32[8], index: 0, kind: input, shape index: {}]
  %s1 = inlined_call_operand.vmem [shape: f32[16,32], index: 1, kind: input, shape index: {}]
  %s2 = inlined_call_operand.vmem [shape: f32[16,16], index: 2, kind: input, shape index: {}]
  %s3 = inlined_call_operand.vmem [shape: f32[32,32], index: 3, kind: input, shape index: {}]
  %s4 = inlined_call_operand.hbm [shape: f32[32,32], index: 4, kind: input, shape index: {}]
  %s5 = inlined_call_operand.hbm [shape: f32[32,32], index: 5, kind: input, shape index: {}]
  %s6 = inlined_call_operand.hbm [shape: f32[32,32], index: 6, kind: input, shape index: {}]
  %s7 = inlined_call_operand.hbm [shape: f32[4,1,32], index: 7, kind: input, shape index: {}]
  %s8 = inlined_call_operand.hbm [shape: f32[4,1,32], index: 8, kind: input, shape index: {}]
  %s9 = inlined_call_operand.hbm [shape: f32[4,1,32], index: 9, kind: input, shape index: {}]
  %s10 = inlined_call_operand.hbm [shape: f32[8,128], index: 10, kind: output, shape index: {}]
  %s11 = sld [smem:[#allocation0]]
  $region78: #{conv_embedding_4_forward.1} parent=0
    _
  %s13 = ssub.s32 1, %s11
  %s14 = scalar_select 0, %s13, %s11
  $region1: #{conv_embedding_4_forward.1} parent=0
    #allocation3 [shape = 'u8[512]{0}', space=smem, size = 0x200, scoped, tag = 'input window, operand 0, single buffered']
    #allocation4 [shape = 's32[1]{0}', space=sflag, size = 0x4, scoped, tag = 'scoped memory for conv_embedding_4_forward.1']
    #allocation5 [shape = 's32[1]{0}', space=sflag, size = 0x4, scoped, tag = 'scoped memory for conv_embedding_4_forward.1']
    #allocation6 [shape = 's32[1]{0}', space=sflag, size = 0x4, scoped, tag = 'scoped memory for conv_embedding_4_forward.1']
    #allocation7 [shape = 'u8[16384]{0}', space=vmem, size = 0x4000, scoped, tag = 'input window, operand 4, single buffered']
    #allocation8 [shape = 'u8[16384]{0}', space=vmem, size = 0x4000, scoped, tag = 'input window, operand 5, single buffered']
    #allocation9 [shape = 's32[1]{0}', space=sflag, size = 0x4, scoped, tag = 'scoped memory for conv_embedding_4_forward.1']
    #allocation10 [shape = 'u8[16384]{0}', space=vmem, size = 0x4000, scoped, tag = 'input window, operand 6, single buffered']
    #allocation11 [shape = 'u8[2048]{0}', space=vmem, size = 0x800, scoped, tag = 'input window, operand 7, single buffered']
    #allocation12 [shape = 's32[1]{0}', space=sflag, size = 0x4, scoped, tag = 'scoped memory for conv_embedding_4_forward.1']
    #allocation13 [shape = 'u8[2048]{0}', space=vmem, size = 0x800, scoped, tag = 'input window, operand 8, single buffered']
    #allocation14 [shape = 'u8[2048]{0}', space=vmem, size = 0x800, scoped, tag = 'input window, operand 9, single buffered']
    #allocation15 [shape = 's32[1]{0}', space=sflag, size = 0x4, scoped, tag = 'scoped memory for conv_embedding_4_forward.1']
    #allocation16 [shape = 'u8[4096]{0}', space=vmem, size = 0x1000, scoped, tag = 'output window, operand 0, single buffered']
    %15 = vsyncpa [#allocation6], 0
    %16 = vsyncpa [#allocation4], 0
    %17 = vsyncpa [#allocation9], 0
    %18 = vsyncpa [#allocation12], 0
    %19 = vsyncpa [#allocation15], 0
    %20 = vsyncpa [#allocation5], 0
    // Predicated region
    $region2: #{conv_embedding_4_forward.1} parent=1 // pred_check
      _
    $region3: #{conv_embedding_4_forward.1} parent=1 // pred_check_branch
      %22 = sbr.rel (0) target = $region5
    $region4: #{conv_embedding_4_forward.1} parent=1 // pred_region
      %24 = vsyncadd [#allocation6], 0
      %s26 = sshll.u32 %s0, 4
      %s27 = int_to_ptr.vmem [resolvable:$true] %s26
      %29 = dma.vmem_to_smem %s27, 16, [#allocation3], [#allocation6]
    $region5: #{conv_embedding_4_forward.1} parent=1 // pred_fallthru
      _
    // Predicated region
    $region6: #{conv_embedding_4_forward.1} parent=1 // pred_check
      _
    $region7: #{conv_embedding_4_forward.1} parent=1 // pred_check_branch
      %31 = sbr.rel (0) target = $region9
    $region8: #{conv_embedding_4_forward.1} parent=1 // pred_region
      _
    $region9: #{conv_embedding_4_forward.1} parent=1 // pred_fallthru
      _
    // Predicated region
    $region10: #{conv_embedding_4_forward.1} parent=1 // pred_check
      _
    $region11: #{conv_embedding_4_forward.1} parent=1 // pred_check_branch
      %33 = sbr.rel (0) target = $region13
    $region12: #{conv_embedding_4_forward.1} parent=1 // pred_region
      _
    $region13: #{conv_embedding_4_forward.1} parent=1 // pred_fallthru
      _
    // Predicated region
    $region14: #{conv_embedding_4_forward.1} parent=1 // pred_check
      _
    $region15: #{conv_embedding_4_forward.1} parent=1 // pred_check_branch
      %35 = sbr.rel (0) target = $region17
    $region16: #{conv_embedding_4_forward.1} parent=1 // pred_region
      _
    $region17: #{conv_embedding_4_forward.1} parent=1 // pred_fallthru
      _
    // Predicated region
    $region18: #{conv_embedding_4_forward.1} parent=1 // pred_check
      _
    $region19: #{conv_embedding_4_forward.1} parent=1 // pred_check_branch
      %37 = sbr.rel (0) target = $region21
    $region20: #{conv_embedding_4_forward.1} parent=1 // pred_region
      %39 = vsyncadd [#allocation4], 0
      %s40 = sshll.u32 %s4, 4
      %s41 = int_to_ptr.hbm [resolvable:$true] %s40
      %s42 = sshll.u32 [#allocation7], 4
      %s43 = int_to_ptr.vmem [resolvable:$true] %s42
      %48 = dma.hbm_to_vmem [thread:$0]  %s41, 512, %s43, [#allocation4], 128, 128, 8
    $region21: #{conv_embedding_4_forward.1} parent=1 // pred_fallthru
      _
    // Predicated region
    $region22: #{conv_embedding_4_forward.1} parent=1 // pred_check
      _
    $region23: #{conv_embedding_4_forward.1} parent=1 // pred_check_branch
      %50 = sbr.rel (0) target = $region25
    $region24: #{conv_embedding_4_forward.1} parent=1 // pred_region
      %52 = vsyncadd [#allocation9], 0
      %s53 = sshll.u32 %s5, 4
      %s54 = int_to_ptr.hbm [resolvable:$true] %s53
      %s55 = sshll.u32 [#allocation8], 4
      %s56 = int_to_ptr.vmem [resolvable:$true] %s55
      %61 = dma.hbm_to_vmem [thread:$0]  %s54, 512, %s56, [#allocation9], 128, 128, 8
    $region25: #{conv_embedding_4_forward.1} parent=1 // pred_fallthru
      _
    // Predicated region
    $region26: #{conv_embedding_4_forward.1} parent=1 // pred_check
      _
    $region27: #{conv_embedding_4_forward.1} parent=1 // pred_check_branch
      %63 = sbr.rel (0) target = $region29
    $region28: #{conv_embedding_4_forward.1} parent=1 // pred_region
      %65 = vsyncadd [#allocation9], 0
      %s66 = sshll.u32 %s6, 4
      %s67 = int_to_ptr.hbm [resolvable:$true] %s66
      %s68 = sshll.u32 [#allocation10], 4
      %s69 = int_to_ptr.vmem [resolvable:$true] %s68
      %74 = dma.hbm_to_vmem [thread:$0]  %s67, 512, %s69, [#allocation9], 128, 128, 8
    $region29: #{conv_embedding_4_forward.1} parent=1 // pred_fallthru
      _
    // Predicated region
    $region30: #{conv_embedding_4_forward.1} parent=1 // pred_check
      _
    $region31: #{conv_embedding_4_forward.1} parent=1 // pred_check_branch
      %76 = sbr.rel (0) target = $region33
    $region32: #{conv_embedding_4_forward.1} parent=1 // pred_region
      %78 = vsyncadd [#allocation12], 0
      %s79 = sshll.u32 %s7, 4
      %s80 = int_to_ptr.hbm [resolvable:$true] %s79
      %s81 = sshll.u32 [#allocation11], 4
      %s82 = int_to_ptr.vmem [resolvable:$true] %s81
      %87 = dma.hbm_to_vmem [thread:$0]  %s80, 64, %s82, [#allocation12], 16, 16, 1
    $region33: #{conv_embedding_4_forward.1} parent=1 // pred_fallthru
      _
    // Predicated region
    $region34: #{conv_embedding_4_forward.1} parent=1 // pred_check
      _
    $region35: #{conv_embedding_4_forward.1} parent=1 // pred_check_branch
      %89 = sbr.rel (0) target = $region37
    $region36: #{conv_embedding_4_forward.1} parent=1 // pred_region
      %91 = vsyncadd [#allocation12], 0
      %s92 = sshll.u32 %s8, 4
      %s93 = int_to_ptr.hbm [resolvable:$true] %s92
      %s94 = sshll.u32 [#allocation13], 4
      %s95 = int_to_ptr.vmem [resolvable:$true] %s94
      %100 = dma.hbm_to_vmem [thread:$0]  %s93, 64, %s95, [#allocation12], 16, 16, 1
    $region37: #{conv_embedding_4_forward.1} parent=1 // pred_fallthru
      _
    // Predicated region
    $region38: #{conv_embedding_4_forward.1} parent=1 // pred_check
      _
    $region39: #{conv_embedding_4_forward.1} parent=1 // pred_check_branch
      %102 = sbr.rel (0) target = $region41
    $region40: #{conv_embedding_4_forward.1} parent=1 // pred_region
      %104 = vsyncadd [#allocation15], 0
      %s105 = sshll.u32 %s9, 4
      %s106 = int_to_ptr.hbm [resolvable:$true] %s105
      %s107 = sshll.u32 [#allocation14], 4
      %s108 = int_to_ptr.vmem [resolvable:$true] %s107
      %113 = dma.hbm_to_vmem [thread:$0]  %s106, 64, %s108, [#allocation15], 16, 16, 1
    $region41: #{conv_embedding_4_forward.1} parent=1 // pred_fallthru
      _
    // Predicated region
    $region42: #{conv_embedding_4_forward.1} parent=1 // pred_check
      _
    $region43: #{conv_embedding_4_forward.1} parent=1 // pred_check_branch
      %115 = sbr.rel (0) target = $region45
    $region44: #{conv_embedding_4_forward.1} parent=1 // pred_region
      %117 = dma.done [#allocation6], 16
    $region45: #{conv_embedding_4_forward.1} parent=1 // pred_fallthru
      _
    // Predicated region
    $region46: #{conv_embedding_4_forward.1} parent=1 // pred_check
      _
    $region47: #{conv_embedding_4_forward.1} parent=1 // pred_check_branch
      %119 = sbr.rel (0) target = $region49
    $region48: #{conv_embedding_4_forward.1} parent=1 // pred_region
      %121 = dma.done [#allocation4], 512
    $region49: #{conv_embedding_4_forward.1} parent=1 // pred_fallthru
      _
    // Predicated region
    $region50: #{conv_embedding_4_forward.1} parent=1 // pred_check
      _
    $region51: #{conv_embedding_4_forward.1} parent=1 // pred_check_branch
      %123 = sbr.rel (0) target = $region53
    $region52: #{conv_embedding_4_forward.1} parent=1 // pred_region
      %125 = dma.done [#allocation9], 512
    $region53: #{conv_embedding_4_forward.1} parent=1 // pred_fallthru
      _
    // Predicated region
    $region54: #{conv_embedding_4_forward.1} parent=1 // pred_check
      _
    $region55: #{conv_embedding_4_forward.1} parent=1 // pred_check_branch
      %127 = sbr.rel (0) target = $region57
    $region56: #{conv_embedding_4_forward.1} parent=1 // pred_region
      %129 = dma.done [#allocation9], 512
    $region57: #{conv_embedding_4_forward.1} parent=1 // pred_fallthru
      _
    // Predicated region
    $region58: #{conv_embedding_4_forward.1} parent=1 // pred_check
      _
    $region59: #{conv_embedding_4_forward.1} parent=1 // pred_check_branch
      %131 = sbr.rel (0) target = $region61
    $region60: #{conv_embedding_4_forward.1} parent=1 // pred_region
      %133 = dma.done [#allocation12], 64
    $region61: #{conv_embedding_4_forward.1} parent=1 // pred_fallthru
      _
    // Predicated region
    $region62: #{conv_embedding_4_forward.1} parent=1 // pred_check
      _
    $region63: #{conv_embedding_4_forward.1} parent=1 // pred_check_branch
      %135 = sbr.rel (0) target = $region65
    $region64: #{conv_embedding_4_forward.1} parent=1 // pred_region
      %137 = dma.done [#allocation12], 64
    $region65: #{conv_embedding_4_forward.1} parent=1 // pred_fallthru
      _
    // Predicated region
    $region66: #{conv_embedding_4_forward.1} parent=1 // pred_check
      _
    $region67: #{conv_embedding_4_forward.1} parent=1 // pred_check_branch
      %139 = sbr.rel (0) target = $region69
    $region68: #{conv_embedding_4_forward.1} parent=1 // pred_region
      %141 = dma.done [#allocation15], 64
    $region69: #{conv_embedding_4_forward.1} parent=1 // pred_fallthru
      _
    %142 = sfence
    %v143 = vld [vmem:[%s1] sm:$0xff]
    %v144 = vld [vmem:[%s1 + $0x8] sm:$0xff]
    %v145 = vld [vmem:[%s2] sm:$0xff]
    %v146 = vld [vmem:[%s2 + $0x8] sm:$0xff]
    %v147 = vld [vmem:[%s3] sm:$0xff]
    %v148 = vld [vmem:[%s3 + $0x8] sm:$0xff]
    %v149 = vld [vmem:[%s3 + $0x10] sm:$0xff]
    %v150 = vld [vmem:[%s3 + $0x18] sm:$0xff]
    %v151 = vld [vmem:[#allocation11] sm:$0x1]
    %v153 = vperm.slane %v151, 0
    %vm155 = vcmask 261120
    %v157 = vsel %vm155, %v143, 0
    %v160 = vsel %vm155, %v144, 0
    %162 = vmatpush.msra.mxu0 0.0
    %163 = vmatpush.msra.mxu0 0.0
    %164 = vmatpush.msra.mxu0 0.0
    %165 = vmatpush.msra.mxu0 0.0
    %166 = vmatpush.msra.mxu0 0.0
    %167 = vmatpush.msra.mxu0 0.0
    %168 = vmatpush.msra.mxu0 0.0
    %169 = vmatpush.msra.mxu0 0.0
    %170 = vmatpush.msra.mxu0 0.0
    %171 = vmatpush.msra.mxu0 0.0
    %172 = vmatpush.msra.mxu0 0.0
    %173 = vmatpush.msra.mxu0 0.0
    %174 = vmatpush.msra.mxu0 %v150
    %175 = vmatpush.msra.mxu0 %v149
    %176 = vmatpush.msra.mxu0 %v148
    %177 = vmatpush.msra.mxu0 %v147
    %178 = vmatmul.f32.gmra.mxu0 %v157
    %v179 = vpop.f32.mrf.mxu0
    %v180 = vadd.f32 %v153, %v179
    %181 = vmatmul.f32.gmra.mxu0 %v160
    %v182 = vpop.f32.mrf.mxu0
    %v183 = vadd.f32 %v153, %v182
    %184 = vdwg.mxu0
    %vm185 = vcmask 130048
    %v187 = vsel %vm185, %v145, 0
    %v190 = vsel %vm185, %v146, 0
    %192 = vmatpush.msra.mxu0 0.0
    %193 = vmatpush.msra.mxu0 0.0
    %194 = vmatpush.msra.mxu0 0.0
    %195 = vmatpush.msra.mxu0 0.0
    %196 = vmatpush.msra.mxu0 0.0
    %197 = vmatpush.msra.mxu0 0.0
    %198 = vmatpush.msra.mxu0 0.0
    %199 = vmatpush.msra.mxu0 0.0
    %200 = vmatpush.msra.mxu0 0.0
    %201 = vmatpush.msra.mxu0 0.0
    %202 = vmatpush.msra.mxu0 0.0
    %203 = vmatpush.msra.mxu0 0.0
    %204 = vmatpush.msra.mxu0 0.0
    %205 = vmatpush.msra.mxu0 0.0
    %206 = vmatpush.msra.mxu0 %v183
    %207 = vmatpush.msra.mxu0 %v180
    %208 = vmatmul.f32.gmra.mxu0 %v187
    %v209 = vpop.f32.mrf.mxu0
    %v210 = vadd.f32 0.0, %v209
    %211 = vmatmul.f32.gmra.mxu0 %v190
    %v212 = vpop.f32.mrf.mxu0
    %v213 = vadd.f32 0.0, %v212
    %214 = vdwg.mxu0
    %v215 = vmax.f32 %v210, 0.0
    %v216 = vmax.f32 %v213, 0.0
    %v217 = vsel %vm155, %v215, 0.0
    %218 = vadd.xlane.f32.xlu0 %v217
    %v219 = vpop.xlane.xlu0 %218
    %v220 = vsel %vm155, %v216, 0.0
    %221 = vadd.xlane.f32.xlu0 %v220
    %v222 = vpop.xlane.xlu0 %221
    %v223 = vrcp.pop 32.0
    %v224 = vmul.f32 32.0, %v223
    %v225 = vsub.f32 1.0, %v224
    %v226 = vmul.f32 %v223, %v225
    %v227 = vadd.f32 %v223, %v226
    %vm228 = vweird.f32 %v223
    %v229 = vsel %vm228, %v223, %v227
    %v230 = vmul.f32 %v219, %v229
    %v231 = vmul.f32 %v222, %v229
    %v232 = vmul.f32 %v215, %v215
    %v233 = vmul.f32 %v216, %v216
    %v234 = vsel %vm155, %v232, 0.0
    %235 = vadd.xlane.f32.xlu0 %v234
    %v236 = vpop.xlane.xlu0 %235
    %v237 = vsel %vm155, %v233, 0.0
    %238 = vadd.xlane.f32.xlu0 %v237
    %v239 = vpop.xlane.xlu0 %238
    %v240 = vmul.f32 %v236, %v229
    %v241 = vmul.f32 %v239, %v229
    %v242 = vmul.f32 %v230, %v230
    %v243 = vmul.f32 %v231, %v231
    %v244 = vsub.f32 %v240, %v242
    %v245 = vsub.f32 %v241, %v243
    %v246 = vsub.f32 %v215, %v230
    %v247 = vsub.f32 %v216, %v231
    %v248 = vadd.f32 %v244, 1e-05
    %v249 = vadd.f32 %v245, 1e-05
    %v250 = vrsqrt.pop %v248
    %v251 = vmul.f32 %v250, %v248
    %v252 = vmul.f32 %v251, %v250
    %v253 = vmul.f32 0.5, %v252
    %v254 = vsub.f32 1.5, %v253
    %v255 = vmul.f32 %v250, %v254
    %vm256 = vweird.f32 %v248
    %vm257 = vweird.f32 %v250
    %vm258 = vmor %vm256, %vm257
    %v259 = vsel %vm258, %v250, %v255
    %v260 = vrsqrt.pop %v249
    %v261 = vmul.f32 %v260, %v249
    %v262 = vmul.f32 %v261, %v260
    %v263 = vmul.f32 0.5, %v262
    %v264 = vsub.f32 1.5, %v263
    %v265 = vmul.f32 %v260, %v264
    %vm266 = vweird.f32 %v249
    %vm267 = vweird.f32 %v260
    %vm268 = vmor %vm266, %vm267
    %v269 = vsel %vm268, %v260, %v265
    %v270 = vmul.f32 %v246, %v259
    %v271 = vmul.f32 %v247, %v269
    %v272 = vld [vmem:[#allocation13] sm:$0x1]
    %v274 = vperm.slane %v272, 0
    %v276 = vmul.f32 %v270, %v274
    %v277 = vmul.f32 %v271, %v274
    %v278 = vld [vmem:[#allocation14] sm:$0x1]
    %v280 = vperm.slane %v278, 0
    %v282 = vadd.f32 %v276, %v280
    %v283 = vadd.f32 %v277, %v280
    %v284 = vld [vmem:[#allocation7] sm:$0xff]
    %v285 = vld [vmem:[#allocation7 + $0x8] sm:$0xff]
    %v286 = vld [vmem:[#allocation7 + $0x10] sm:$0xff]
    %v287 = vld [vmem:[#allocation7 + $0x18] sm:$0xff]
    %s288 = scalar_lea.vmem [#allocation11], 1
    %v289 = vld [vmem:[%s288] sm:$0x1]
    %v291 = vperm.slane %v289, 0
    %v294 = vsel %vm155, %v282, 0
    %v297 = vsel %vm155, %v283, 0
    %299 = vmatpush.msra.mxu0 0.0
    %300 = vmatpush.msra.mxu0 0.0
    %301 = vmatpush.msra.mxu0 0.0
    %302 = vmatpush.msra.mxu0 0.0
    %303 = vmatpush.msra.mxu0 0.0
    %304 = vmatpush.msra.mxu0 0.0
    %305 = vmatpush.msra.mxu0 0.0
    %306 = vmatpush.msra.mxu0 0.0
    %307 = vmatpush.msra.mxu0 0.0
    %308 = vmatpush.msra.mxu0 0.0
    %309 = vmatpush.msra.mxu0 0.0
    %310 = vmatpush.msra.mxu0 0.0
    %311 = vmatpush.msra.mxu0 %v287
    %312 = vmatpush.msra.mxu0 %v286
    %313 = vmatpush.msra.mxu0 %v285
    %314 = vmatpush.msra.mxu0 %v284
    %315 = vmatmul.f32.gmra.mxu0 %v294
    %v316 = vpop.f32.mrf.mxu0
    %v317 = vadd.f32 %v291, %v316
    %318 = vmatmul.f32.gmra.mxu0 %v297
    %v319 = vpop.f32.mrf.mxu0
    %v320 = vadd.f32 %v291, %v319
    %321 = vdwg.mxu0
    %322 = vmatpush.msra.mxu0 0.0
    %323 = vmatpush.msra.mxu0 0.0
    %324 = vmatpush.msra.mxu0 0.0
    %325 = vmatpush.msra.mxu0 0.0
    %326 = vmatpush.msra.mxu0 0.0
    %327 = vmatpush.msra.mxu0 0.0
    %328 = vmatpush.msra.mxu0 0.0
    %329 = vmatpush.msra.mxu0 0.0
    %330 = vmatpush.msra.mxu0 0.0
    %331 = vmatpush.msra.mxu0 0.0
    %332 = vmatpush.msra.mxu0 0.0
    %333 = vmatpush.msra.mxu0 0.0
    %334 = vmatpush.msra.mxu0 0.0
    %335 = vmatpush.msra.mxu0 0.0
    %336 = vmatpush.msra.mxu0 %v320
    %337 = vmatpush.msra.mxu0 %v317
    %338 = vmatmul.f32.gmra.mxu0 %v187
    %v339 = vpop.f32.mrf.mxu0
    %v340 = vadd.f32 0.0, %v339
    %341 = vmatmul.f32.gmra.mxu0 %v190
    %v342 = vpop.f32.mrf.mxu0
    %v343 = vadd.f32 0.0, %v342
    %344 = vdwg.mxu0
    %v345 = vmax.f32 %v340, 0.0
    %v346 = vmax.f32 %v343, 0.0
    %v347 = vsel %vm155, %v345, 0.0
    %348 = vadd.xlane.f32.xlu0 %v347
    %v349 = vpop.xlane.xlu0 %348
    %v350 = vsel %vm155, %v346, 0.0
    %351 = vadd.xlane.f32.xlu0 %v350
    %v352 = vpop.xlane.xlu0 %351
    %v353 = vmul.f32 %v349, %v229
    %v354 = vmul.f32 %v352, %v229
    %v355 = vmul.f32 %v345, %v345
    %v356 = vmul.f32 %v346, %v346
    %v357 = vsel %vm155, %v355, 0.0
    %358 = vadd.xlane.f32.xlu0 %v357
    %v359 = vpop.xlane.xlu0 %358
    %v360 = vsel %vm155, %v356, 0.0
    %361 = vadd.xlane.f32.xlu0 %v360
    %v362 = vpop.xlane.xlu0 %361
    %v363 = vmul.f32 %v359, %v229
    %v364 = vmul.f32 %v362, %v229
    %v365 = vmul.f32 %v353, %v353
    %v366 = vmul.f32 %v354, %v354
    %v367 = vsub.f32 %v363, %v365
    %v368 = vsub.f32 %v364, %v366
    %v369 = vsub.f32 %v345, %v353
    %v370 = vsub.f32 %v346, %v354
    %v371 = vadd.f32 %v367, 1e-05
    %v372 = vadd.f32 %v368, 1e-05
    %v373 = vrsqrt.pop %v371
    %v374 = vmul.f32 %v373, %v371
    %v375 = vmul.f32 %v374, %v373
    %v376 = vmul.f32 0.5, %v375
    %v377 = vsub.f32 1.5, %v376
    %v378 = vmul.f32 %v373, %v377
    %vm379 = vweird.f32 %v371
    %vm380 = vweird.f32 %v373
    %vm381 = vmor %vm379, %vm380
    %v382 = vsel %vm381, %v373, %v378
    %v383 = vrsqrt.pop %v372
    %v384 = vmul.f32 %v383, %v372
    %v385 = vmul.f32 %v384, %v383
    %v386 = vmul.f32 0.5, %v385
    %v387 = vsub.f32 1.5, %v386
    %v388 = vmul.f32 %v383, %v387
    %vm389 = vweird.f32 %v372
    %vm390 = vweird.f32 %v383
    %vm391 = vmor %vm389, %vm390
    %v392 = vsel %vm391, %v383, %v388
    %v393 = vmul.f32 %v369, %v382
    %v394 = vmul.f32 %v370, %v392
    %s395 = scalar_lea.vmem [#allocation13], 1
    %v396 = vld [vmem:[%s395] sm:$0x1]
    %v398 = vperm.slane %v396, 0
    %v400 = vmul.f32 %v393, %v398
    %v401 = vmul.f32 %v394, %v398
    %s402 = scalar_lea.vmem [#allocation14], 1
    %v403 = vld [vmem:[%s402] sm:$0x1]
    %v405 = vperm.slane %v403, 0
    %v407 = vadd.f32 %v400, %v405
    %v408 = vadd.f32 %v401, %v405
    %v409 = vld [vmem:[#allocation8] sm:$0xff]
    %v410 = vld [vmem:[#allocation8 + $0x8] sm:$0xff]
    %v411 = vld [vmem:[#allocation8 + $0x10] sm:$0xff]
    %v412 = vld [vmem:[#allocation8 + $0x18] sm:$0xff]
    %s413 = scalar_lea.vmem [#allocation11], 2
    %v414 = vld [vmem:[%s413] sm:$0x1]
    %v416 = vperm.slane %v414, 0
    %v419 = vsel %vm155, %v407, 0
    %v422 = vsel %vm155, %v408, 0
    %424 = vmatpush.msra.mxu0 0.0
    %425 = vmatpush.msra.mxu0 0.0
    %426 = vmatpush.msra.mxu0 0.0
    %427 = vmatpush.msra.mxu0 0.0
    %428 = vmatpush.msra.mxu0 0.0
    %429 = vmatpush.msra.mxu0 0.0
    %430 = vmatpush.msra.mxu0 0.0
    %431 = vmatpush.msra.mxu0 0.0
    %432 = vmatpush.msra.mxu0 0.0
    %433 = vmatpush.msra.mxu0 0.0
    %434 = vmatpush.msra.mxu0 0.0
    %435 = vmatpush.msra.mxu0 0.0
    %436 = vmatpush.msra.mxu0 %v412
    %437 = vmatpush.msra.mxu0 %v411
    %438 = vmatpush.msra.mxu0 %v410
    %439 = vmatpush.msra.mxu0 %v409
    %440 = vmatmul.f32.gmra.mxu0 %v419
    %v441 = vpop.f32.mrf.mxu0
    %v442 = vadd.f32 %v416, %v441
    %443 = vmatmul.f32.gmra.mxu0 %v422
    %v444 = vpop.f32.mrf.mxu0
    %v445 = vadd.f32 %v416, %v444
    %446 = vdwg.mxu0
    %447 = vmatpush.msra.mxu0 0.0
    %448 = vmatpush.msra.mxu0 0.0
    %449 = vmatpush.msra.mxu0 0.0
    %450 = vmatpush.msra.mxu0 0.0
    %451 = vmatpush.msra.mxu0 0.0
    %452 = vmatpush.msra.mxu0 0.0
    %453 = vmatpush.msra.mxu0 0.0
    %454 = vmatpush.msra.mxu0 0.0
    %455 = vmatpush.msra.mxu0 0.0
    %456 = vmatpush.msra.mxu0 0.0
    %457 = vmatpush.msra.mxu0 0.0
    %458 = vmatpush.msra.mxu0 0.0
    %459 = vmatpush.msra.mxu0 0.0
    %460 = vmatpush.msra.mxu0 0.0
    %461 = vmatpush.msra.mxu0 %v445
    %462 = vmatpush.msra.mxu0 %v442
    %463 = vmatmul.f32.gmra.mxu0 %v187
    %v464 = vpop.f32.mrf.mxu0
    %v465 = vadd.f32 0.0, %v464
    %466 = vmatmul.f32.gmra.mxu0 %v190
    %v467 = vpop.f32.mrf.mxu0
    %v468 = vadd.f32 0.0, %v467
    %469 = vdwg.mxu0
    %v470 = vmax.f32 %v465, 0.0
    %v471 = vmax.f32 %v468, 0.0
    %v472 = vsel %vm155, %v470, 0.0
    %473 = vadd.xlane.f32.xlu0 %v472
    %v474 = vpop.xlane.xlu0 %473
    %v475 = vsel %vm155, %v471, 0.0
    %476 = vadd.xlane.f32.xlu0 %v475
    %v477 = vpop.xlane.xlu0 %476
    %v478 = vmul.f32 %v474, %v229
    %v479 = vmul.f32 %v477, %v229
    %v480 = vmul.f32 %v470, %v470
    %v481 = vmul.f32 %v471, %v471
    %v482 = vsel %vm155, %v480, 0.0
    %483 = vadd.xlane.f32.xlu0 %v482
    %v484 = vpop.xlane.xlu0 %483
    %v485 = vsel %vm155, %v481, 0.0
    %486 = vadd.xlane.f32.xlu0 %v485
    %v487 = vpop.xlane.xlu0 %486
    %v488 = vmul.f32 %v484, %v229
    %v489 = vmul.f32 %v487, %v229
    %v490 = vmul.f32 %v478, %v478
    %v491 = vmul.f32 %v479, %v479
    %v492 = vsub.f32 %v488, %v490
    %v493 = vsub.f32 %v489, %v491
    %v494 = vsub.f32 %v470, %v478
    %v495 = vsub.f32 %v471, %v479
    %v496 = vadd.f32 %v492, 1e-05
    %v497 = vadd.f32 %v493, 1e-05
    %v498 = vrsqrt.pop %v496
    %v499 = vmul.f32 %v498, %v496
    %v500 = vmul.f32 %v499, %v498
    %v501 = vmul.f32 0.5, %v500
    %v502 = vsub.f32 1.5, %v501
    %v503 = vmul.f32 %v498, %v502
    %vm504 = vweird.f32 %v496
    %vm505 = vweird.f32 %v498
    %vm506 = vmor %vm504, %vm505
    %v507 = vsel %vm506, %v498, %v503
    %v508 = vrsqrt.pop %v497
    %v509 = vmul.f32 %v508, %v497
    %v510 = vmul.f32 %v509, %v508
    %v511 = vmul.f32 0.5, %v510
    %v512 = vsub.f32 1.5, %v511
    %v513 = vmul.f32 %v508, %v512
    %vm514 = vweird.f32 %v497
    %vm515 = vweird.f32 %v508
    %vm516 = vmor %vm514, %vm515
    %v517 = vsel %vm516, %v508, %v513
    %v518 = vmul.f32 %v494, %v507
    %v519 = vmul.f32 %v495, %v517
    %s520 = scalar_lea.vmem [#allocation13], 2
    %v521 = vld [vmem:[%s520] sm:$0x1]
    %v523 = vperm.slane %v521, 0
    %v525 = vmul.f32 %v518, %v523
    %v526 = vmul.f32 %v519, %v523
    %s527 = scalar_lea.vmem [#allocation14], 2
    %v528 = vld [vmem:[%s527] sm:$0x1]
    %v530 = vperm.slane %v528, 0
    %v532 = vadd.f32 %v525, %v530
    %v533 = vadd.f32 %v526, %v530
    %v534 = vld [vmem:[#allocation10] sm:$0xff]
    %v535 = vld [vmem:[#allocation10 + $0x8] sm:$0xff]
    %v536 = vld [vmem:[#allocation10 + $0x10] sm:$0xff]
    %v537 = vld [vmem:[#allocation10 + $0x18] sm:$0xff]
    %s538 = scalar_lea.vmem [#allocation11], 3
    %v539 = vld [vmem:[%s538] sm:$0x1]
    %v541 = vperm.slane %v539, 0
    %v544 = vsel %vm155, %v532, 0
    %v547 = vsel %vm155, %v533, 0
    %549 = vmatpush.msra.mxu0 0.0
    %550 = vmatpush.msra.mxu0 0.0
    %551 = vmatpush.msra.mxu0 0.0
    %552 = vmatpush.msra.mxu0 0.0
    %553 = vmatpush.msra.mxu0 0.0
    %554 = vmatpush.msra.mxu0 0.0
    %555 = vmatpush.msra.mxu0 0.0
    %556 = vmatpush.msra.mxu0 0.0
    %557 = vmatpush.msra.mxu0 0.0
    %558 = vmatpush.msra.mxu0 0.0
    %559 = vmatpush.msra.mxu0 0.0
    %560 = vmatpush.msra.mxu0 0.0
    %561 = vmatpush.msra.mxu0 %v537
    %562 = vmatpush.msra.mxu0 %v536
    %563 = vmatpush.msra.mxu0 %v535
    %564 = vmatpush.msra.mxu0 %v534
    %565 = vmatmul.f32.gmra.mxu0 %v544
    %v566 = vpop.f32.mrf.mxu0
    %v567 = vadd.f32 %v541, %v566
    %568 = vmatmul.f32.gmra.mxu0 %v547
    %v569 = vpop.f32.mrf.mxu0
    %v570 = vadd.f32 %v541, %v569
    %571 = vdwg.mxu0
    %572 = vmatpush.msra.mxu0 0.0
    %573 = vmatpush.msra.mxu0 0.0
    %574 = vmatpush.msra.mxu0 0.0
    %575 = vmatpush.msra.mxu0 0.0
    %576 = vmatpush.msra.mxu0 0.0
    %577 = vmatpush.msra.mxu0 0.0
    %578 = vmatpush.msra.mxu0 0.0
    %579 = vmatpush.msra.mxu0 0.0
    %580 = vmatpush.msra.mxu0 0.0
    %581 = vmatpush.msra.mxu0 0.0
    %582 = vmatpush.msra.mxu0 0.0
    %583 = vmatpush.msra.mxu0 0.0
    %584 = vmatpush.msra.mxu0 0.0
    %585 = vmatpush.msra.mxu0 0.0
    %586 = vmatpush.msra.mxu0 %v570
    %587 = vmatpush.msra.mxu0 %v567
    %588 = vmatmul.f32.gmra.mxu0 %v187
    %v589 = vpop.f32.mrf.mxu0
    %v590 = vadd.f32 0.0, %v589
    %591 = vmatmul.f32.gmra.mxu0 %v190
    %v592 = vpop.f32.mrf.mxu0
    %v593 = vadd.f32 0.0, %v592
    %594 = vdwg.mxu0
    %v595 = vmax.f32 %v590, 0.0
    %v596 = vmax.f32 %v593, 0.0
    %v597 = vsel %vm155, %v595, 0.0
    %598 = vadd.xlane.f32.xlu0 %v597
    %v599 = vpop.xlane.xlu0 %598
    %v600 = vsel %vm155, %v596, 0.0
    %601 = vadd.xlane.f32.xlu0 %v600
    %v602 = vpop.xlane.xlu0 %601
    %v603 = vmul.f32 %v599, %v229
    %v604 = vmul.f32 %v602, %v229
    %v605 = vmul.f32 %v595, %v595
    %v606 = vmul.f32 %v596, %v596
    %v607 = vsel %vm155, %v605, 0.0
    %608 = vadd.xlane.f32.xlu0 %v607
    %v609 = vpop.xlane.xlu0 %608
    %v610 = vsel %vm155, %v606, 0.0
    %611 = vadd.xlane.f32.xlu0 %v610
    %v612 = vpop.xlane.xlu0 %611
    %v613 = vmul.f32 %v609, %v229
    %v614 = vmul.f32 %v612, %v229
    %v615 = vmul.f32 %v603, %v603
    %v616 = vmul.f32 %v604, %v604
    %v617 = vsub.f32 %v613, %v615
    %v618 = vsub.f32 %v614, %v616
    %v619 = vsub.f32 %v595, %v603
    %v620 = vsub.f32 %v596, %v604
    %v621 = vadd.f32 %v617, 1e-05
    %v622 = vadd.f32 %v618, 1e-05
    %v623 = vrsqrt.pop %v621
    %v624 = vmul.f32 %v623, %v621
    %v625 = vmul.f32 %v624, %v623
    %v626 = vmul.f32 0.5, %v625
    %v627 = vsub.f32 1.5, %v626
    %v628 = vmul.f32 %v623, %v627
    %vm629 = vweird.f32 %v621
    %vm630 = vweird.f32 %v623
    %vm631 = vmor %vm629, %vm630
    %v632 = vsel %vm631, %v623, %v628
    %v633 = vrsqrt.pop %v622
    %v634 = vmul.f32 %v633, %v622
    %v635 = vmul.f32 %v634, %v633
    %v636 = vmul.f32 0.5, %v635
    %v637 = vsub.f32 1.5, %v636
    %v638 = vmul.f32 %v633, %v637
    %vm639 = vweird.f32 %v622
    %vm640 = vweird.f32 %v633
    %vm641 = vmor %vm639, %vm640
    %v642 = vsel %vm641, %v633, %v638
    %v643 = vmul.f32 %v619, %v632
    %v644 = vmul.f32 %v620, %v642
    %s645 = scalar_lea.vmem [#allocation13], 3
    %v646 = vld [vmem:[%s645] sm:$0x1]
    %v648 = vperm.slane %v646, 0
    %v650 = vmul.f32 %v643, %v648
    %v651 = vmul.f32 %v644, %v648
    %s652 = scalar_lea.vmem [#allocation14], 3
    %v653 = vld [vmem:[%s652] sm:$0x1]
    %v655 = vperm.slane %v653, 0
    %v657 = vadd.f32 %v650, %v655
    %v658 = vadd.f32 %v651, %v655
    %659 = vrot.lane.b32.xlu0 %v407, 32
    %v660 = vpop.permute.xlu0 %659
    %661 = vrot.lane.b32.xlu0 %v408, 32
    %v662 = vpop.permute.xlu0 %661
    %665 = vrot.lane.b32.xlu0 %v532, 64
    %v666 = vpop.permute.xlu0 %665
    %667 = vrot.lane.b32.xlu0 %v533, 64
    %v668 = vpop.permute.xlu0 %667
    %673 = vrot.lane.b32.xlu0 %v657, 96
    %v674 = vpop.permute.xlu0 %673
    %675 = vrot.lane.b32.xlu0 %v658, 96
    %v676 = vpop.permute.xlu0 %675
    %v679 = vsel %vm155, %v282, %v660
    %v680 = vsel %vm155, %v283, %v662
    %vm681 = vcmask 523264
    %v682 = vsel %vm681, %v679, %v666
    %v683 = vsel %vm681, %v680, %v668
    %vm684 = vcmask 785408
    %v685 = vsel %vm684, %v682, %v674
    %v686 = vsel %vm684, %v683, %v676
    %687 = vst [vmem:[#allocation2] sm:$0xff] %v685
    %688 = vst [vmem:[#allocation2 + $0x8] sm:$0xff] %v686
    %s689 = sld [smem:[#allocation3]]
    %s690 = scalar_lea.vmem [#allocation2], %s689
    %v691 = vld [vmem:[%s690] sm:$0x1]
    %692 = vst [vmem:[#allocation16] sm:$0x1] %v691
    %s693 = sld [smem:[#allocation3 + $0x1]]
    %s694 = scalar_lea.vmem [#allocation2], %s693
    %v695 = vld [vmem:[%s694] sm:$0x1]
    %696 = vst [vmem:[#allocation16 + $0x1] sm:$0x1] %v695
    %s697 = sld [smem:[#allocation3 + $0x2]]
    %s698 = scalar_lea.vmem [#allocation2], %s697
    %v699 = vld [vmem:[%s698] sm:$0x1]
    %700 = vst [vmem:[#allocation16 + $0x2] sm:$0x1] %v699
    %s701 = sld [smem:[#allocation3 + $0x3]]
    %s702 = scalar_lea.vmem [#allocation2], %s701
    %v703 = vld [vmem:[%s702] sm:$0x1]
    %704 = vst [vmem:[#allocation16 + $0x3] sm:$0x1] %v703
    %s705 = sld [smem:[#allocation3 + $0x4]]
    %s706 = scalar_lea.vmem [#allocation2], %s705
    %v707 = vld [vmem:[%s706] sm:$0x1]
    %708 = vst [vmem:[#allocation16 + $0x4] sm:$0x1] %v707
    %s709 = sld [smem:[#allocation3 + $0x5]]
    %s710 = scalar_lea.vmem [#allocation2], %s709
    %v711 = vld [vmem:[%s710] sm:$0x1]
    %712 = vst [vmem:[#allocation16 + $0x5] sm:$0x1] %v711
    %s713 = sld [smem:[#allocation3 + $0x6]]
    %s714 = scalar_lea.vmem [#allocation2], %s713
    %v715 = vld [vmem:[%s714] sm:$0x1]
    %716 = vst [vmem:[#allocation16 + $0x6] sm:$0x1] %v715
    %s717 = sld [smem:[#allocation3 + $0x7]]
    %s718 = scalar_lea.vmem [#allocation2], %s717
    %v719 = vld [vmem:[%s718] sm:$0x1]
    %720 = vst [vmem:[#allocation16 + $0x7] sm:$0x1] %v719
    // Predicated region
    $region70: #{conv_embedding_4_forward.1} parent=1 // pred_check
      _
    $region71: #{conv_embedding_4_forward.1} parent=1 // pred_check_branch
      %722 = sbr.rel (0) target = $region73
    $region72: #{conv_embedding_4_forward.1} parent=1 // pred_region
      %724 = vsyncadd [#allocation5], 0
      %s726 = sshll.u32 [#allocation16], 4
      %s727 = int_to_ptr.vmem [resolvable:$true] %s726
      %s728 = sshll.u32 %s10, 4
      %s729 = int_to_ptr.hbm [resolvable:$true] %s728
      %731 = dma.vmem_to_hbm [thread:$0]  %s727, 128, %s729, [#allocation5]
    $region73: #{conv_embedding_4_forward.1} parent=1 // pred_fallthru
      _
    // Predicated region
    $region74: #{conv_embedding_4_forward.1} parent=1 // pred_check
      _
    $region75: #{conv_embedding_4_forward.1} parent=1 // pred_check_branch
      %733 = sbr.rel (0) target = $region77
    $region76: #{conv_embedding_4_forward.1} parent=1 // pred_region
      %735 = dma.done [#allocation5], 128
    $region77: #{conv_embedding_4_forward.1} parent=1 // pred_fallthru
      _
    %736 = vsyncpa [#allocation4], 1
    %737 = vsyncpa [#allocation9], 1
    %738 = vsyncpa [#allocation12], 1
    %739 = vsyncpa [#allocation15], 1
    %740 = vsyncpa [#allocation5], 1
    %741 = vsyncpa [#allocation6], 1

</llo_original>
